<compile_context>
chip_gen: v6e
topology: v6e:2x2x1
jax: 0.10.0
libtpu: 0.0.40
codegen_flags: <defaults>
</compile_context>

<pallas_src>
import math

import jax
import jax.numpy as jnp
from jax.experimental import pallas as pl
from jax.experimental.pallas import tpu as pltpu


# ---------------------------------------------------------------------------
# Helpers
# ---------------------------------------------------------------------------
def _round_up(x, m):
    return ((x + m - 1) // m) * m


def _detect_vmem_budget_bytes():
    """Per-generation scoped-VMEM budget (one-time, import-level detection)."""
    kind = ""
    try:
        kind = jax.devices()[0].device_kind.lower()
    except Exception:
        pass
    if "v2" in kind or "v3" in kind:
        return 12 << 20            # 16 MiB physical VMEM
    if "v7" in kind:
        return 52 << 20            # 64 MiB/TC physical -> leave headroom
    if "v4" in kind or "v5" in kind or "v6" in kind:
        return 100 << 20           # 128 MiB physical VMEM
    return 52 << 20                # unknown: be conservative


_VMEM_BUDGET_BYTES = _detect_vmem_budget_bytes()


# ---------------------------------------------------------------------------
# Pallas kernel: fused fc1 -> ReLU -> (dropout=identity) -> fc2
# Accumulates fc2 partial products directly into the resident f32 output block.
# ---------------------------------------------------------------------------
def _ffn_kernel(x_ref, w1_ref, b1_ref, w2_ref, b2_ref, o_ref):
    h = pl.program_id(1)

    # fc1 on the MXU (bf16 x bf16 -> f32); bias + ReLU in f32 on the VPU.
    act = jnp.maximum(
        jnp.dot(x_ref[...], w1_ref[...], preferred_element_type=jnp.float32)
        + b1_ref[...],
        0.0,
    )
    # TODO(synk): dropout treated as eval-mode identity (stochastic op).

    # fc2 partial product for this H tile (f32 accumulation on the MXU).
    partial = jnp.dot(act.astype(w2_ref.dtype), w2_ref[...],
                      preferred_element_type=jnp.float32)

    @pl.when(h == 0)
    def _():
        o_ref[...] = partial + b2_ref[...]

    @pl.when(h > 0)
    def _():
        o_ref[...] = o_ref[...] + partial


# ---------------------------------------------------------------------------
# Wrapper: tiling plan + pallas_call
# ---------------------------------------------------------------------------
def _ffn_pallas(x2d, params):
    N, D = x2d.shape
    H = params["w1"].shape[1]
    w_dtype = params["w1"].dtype
    w_bytes = jnp.dtype(w_dtype).itemsize
    x_bytes = w_bytes                       # X is DMA'd in the matmul dtype
    vmem_cap = _VMEM_BUDGET_BYTES

    # ---- H tiling: keep the whole W1/W2 pair resident whenever it fits.
    # Pipelined inputs get two VMEM buffers each, hence the factor 2.
    def weight_vmem(th_):
        return 2 * 2 * D * th_ * w_bytes    # W1 (D,th) + W2 (th,D), double-buffered

    if weight_vmem(H) <= vmem_cap // 2:
        th = H                               # fully resident, fetched once
    else:
        th = H                               # fall back to whole-H if nothing divides
        for cand in (512, 256, 128):         # multiples of 256 preferred (v6e/v7x MXU)
            if H % cand == 0 and weight_vmem(cand) <= vmem_cap // 2:
                th = cand
                break
    n_h = H // th

    # ---- Row tiling: largest tile that fits the remaining VMEM budget.
    bias_vmem = 2 * 8 * _round_up(th, 128) * 4 + 2 * 8 * _round_up(D, 128) * 4

    def footprint(tm_):
        return (weight_vmem(th) + bias_vmem
                + 2 * tm_ * D * x_bytes       # input rows, double-buffered
                + 2 * tm_ * D * 4             # f32 output rows, double-buffered
                + tm_ * th * 4                # fc1 activation temporary
                + (2 << 20))                  # compiler scratch slack

    tm = 512 if vmem_cap >= (96 << 20) else 256
    tm = min(tm, max(16, _round_up(N, 16)))
    tm = _round_up(tm, 16)
    while tm > 64 and footprint(tm) > vmem_cap:
        tm //= 2
    tm = max(16, _round_up(tm, 16))

    n_pad = _round_up(N, tm)
    # Megacore (v7x): give the "parallel" row axis at least two tiles when the
    # single tile is large enough to split.
    if n_pad // tm == 1 and tm >= 256:
        tm //= 2
        n_pad = _round_up(N, tm)
    n_rows = n_pad // tm

    if n_pad != N:
        x2d = jnp.pad(x2d, ((0, n_pad - N), (0, 0)))
    x2d = x2d.astype(w_dtype)                 # bf16 DMA, no in-kernel cast

    grid_spec = pltpu.PrefetchScalarGridSpec(
        num_scalar_prefetch=0,
        grid=(n_rows, n_h),
        in_specs=[
            pl.BlockSpec((tm, D), lambda i, h: (i, 0)),     # X rows
            pl.BlockSpec((D, th), lambda i, h: (0, h)),     # fc1 weight
            pl.BlockSpec((1, th), lambda i, h: (0, h)),     # fc1 bias
            pl.BlockSpec((th, D), lambda i, h: (h, 0)),     # fc2 weight
            pl.BlockSpec((1, D), lambda i, h: (0, 0)),      # fc2 bias
        ],
        out_specs=pl.BlockSpec((tm, D), lambda i, h: (i, 0)),
    )

    out = pl.pallas_call(
        _ffn_kernel,
        out_shape=jax.ShapeDtypeStruct((n_pad, D), jnp.float32),
        grid_spec=grid_spec,
        compiler_params=pltpu.CompilerParams(
            dimension_semantics=("parallel", "arbitrary"),
            vmem_limit_bytes=int(vmem_cap),
        ),
    )(x2d, params["w1"], params["b1"], params["w2"], params["b2"])

    return out[:N]


def ffn_forward(x, params):
    """x: [..., d_model] -> [..., d_model] float32 (fc2(relu(fc1(x))), eval mode)."""
    orig_shape = x.shape
    D = orig_shape[-1]
    x2d = x.reshape(-1, D)
    out2d = _ffn_pallas(x2d, params)
    return out2d.reshape(orig_shape)


# ---------------------------------------------------------------------------
# Parameters (PyTorch nn.Linear-style init; weights stored pre-transposed
# [in, out] and in bf16 for the MXU, biases in f32) + pure-JAX reference.
# ---------------------------------------------------------------------------
def init_ffn_params(key, d_model, hiddens, *, matmul_dtype=jnp.bfloat16):
    k1, k2, k3, k4 = jax.random.split(key, 4)
    bound1 = 1.0 / math.sqrt(d_model)
    bound2 = 1.0 / math.sqrt(hiddens)
    w1 = jax.random.uniform(k1, (d_model, hiddens), jnp.float32, -bound1, bound1)
    b1 = jax.random.uniform(k2, (1, hiddens), jnp.float32, -bound1, bound1)
    w2 = jax.random.uniform(k3, (hiddens, d_model), jnp.float32, -bound2, bound2)
    b2 = jax.random.uniform(k4, (1, d_model), jnp.float32, -bound2, bound2)
    return dict(w1=w1.astype(matmul_dtype), b1=b1,
                w2=w2.astype(matmul_dtype), b2=b2)


def ffn_reference(x, params):
    w1 = params["w1"].astype(jnp.float32)
    w2 = params["w2"].astype(jnp.float32)
    h = jnp.maximum(x @ w1 + params["b1"], 0.0)
    return h @ w2 + params["b2"]


# ---------------------------------------------------------------------------
# Self-test
# ---------------------------------------------------------------------------
if __name__ == "__main__":
    D_MODEL, HIDDENS, DROPOUT_P = 128, 256, 0.1   # dropout is identity in eval mode
    B, S = 2, 8

    key = jax.random.PRNGKey(0)
    kx, kp = jax.random.split(key)
    x = jax.random.normal(kx, (B, S, D_MODEL), jnp.float32)
    params = init_ffn_params(kp, D_MODEL, HIDDENS)

    out = jax.block_until_ready(ffn_forward(x, params))

    ref = ffn_reference(x, params)
    assert out.shape == (B, S, D_MODEL)
    max_err = float(jnp.max(jnp.abs(out - ref)))
    # bf16 matmul inputs with f32 accumulation -> ~1e-2 level tolerance.
    assert jnp.allclose(out, ref, atol=2e-2, rtol=2e-2), f"mismatch vs reference: {max_err}"

    print("KERNEL_OK")
</pallas_src>

<mosaic_0001>
module attributes {stable_mosaic.version = 11 : i64} {
  func.func @_ffn_kernel(%arg0: i32, %arg1: i32, %arg2: memref<16x128xbf16, #tpu.memory_space<vmem>>, %arg3: memref<128x256xbf16, #tpu.memory_space<vmem>>, %arg4: memref<1x256xf32, #tpu.memory_space<vmem>>, %arg5: memref<256x128xbf16, #tpu.memory_space<vmem>>, %arg6: memref<1x128xf32, #tpu.memory_space<vmem>>, %arg7: memref<16x128xf32, #tpu.memory_space<vmem>>) attributes {dimension_semantics = [#tpu.dimension_semantics<parallel>, #tpu.dimension_semantics<arbitrary>], iteration_bounds = array<i64: 1, 1>, scalar_prefetch = 0 : i64, scratch_operands = 0 : i64, tpu.core_type = #tpu.core_type<tc>, window_params = [{transform_indices = @transform_0, window_bounds = array<i64: 16, 128>}, {transform_indices = @transform_1, window_bounds = array<i64: 128, 256>}, {transform_indices = @transform_2, window_bounds = array<i64: 1, 256>}, {transform_indices = @transform_3, window_bounds = array<i64: 256, 128>}, {pipeline_mode = #tpu.pipeline_mode<synchronous>, transform_indices = @transform_4, window_bounds = array<i64: 1, 128>}, {transform_indices = @transform_5, window_bounds = array<i64: 16, 128>}]} {
    %c0 = arith.constant 0 : index
    %c0_0 = arith.constant 0 : index
    %0 = vector.load %arg2[%c0, %c0_0] : memref<16x128xbf16, #tpu.memory_space<vmem>>, vector<16x128xbf16>
    %c0_1 = arith.constant 0 : index
    %c0_2 = arith.constant 0 : index
    %1 = vector.load %arg3[%c0_1, %c0_2] : memref<128x256xbf16, #tpu.memory_space<vmem>>, vector<128x256xbf16>
    %cst = arith.constant dense<0.000000e+00> : vector<16x256xf32>
    %2 = tpu.matmul %0, %1, %cst {dimension_numbers = #tpu.dot_dimension_numbers<[1], [0], [0], [1], [0, 0, 1, 1], [], []>} : vector<16x128xbf16>, vector<128x256xbf16>, vector<16x256xf32> -> vector<16x256xf32>
    %c0_3 = arith.constant 0 : index
    %c0_4 = arith.constant 0 : index
    %3 = vector.load %arg4[%c0_3, %c0_4] : memref<1x256xf32, #tpu.memory_space<vmem>>, vector<1x256xf32>
    %4 = vector.broadcast %3 : vector<1x256xf32> to vector<16x256xf32>
    %5 = arith.addf %2, %4 : vector<16x256xf32>
    %cst_5 = arith.constant 0.000000e+00 : f32
    %6 = vector.broadcast %cst_5 : f32 to vector<16x256xf32>
    %7 = arith.maximumf %5, %6 : vector<16x256xf32>
    %8 = arith.truncf %7 : vector<16x256xf32> to vector<16x256xbf16>
    %c0_6 = arith.constant 0 : index
    %c0_7 = arith.constant 0 : index
    %9 = vector.load %arg5[%c0_6, %c0_7] : memref<256x128xbf16, #tpu.memory_space<vmem>>, vector<256x128xbf16>
    %cst_8 = arith.constant dense<0.000000e+00> : vector<16x128xf32>
    %10 = tpu.matmul %8, %9, %cst_8 {dimension_numbers = #tpu.dot_dimension_numbers<[1], [0], [0], [1], [0, 0, 1, 1], [], []>} : vector<16x256xbf16>, vector<256x128xbf16>, vector<16x128xf32> -> vector<16x128xf32>
    %c0_i32 = arith.constant 0 : i32
    %11 = arith.cmpi eq, %arg1, %c0_i32 : i32
    %12 = arith.extui %11 : i1 to i32
    %c0_i32_9 = arith.constant 0 : i32
    %13 = arith.cmpi ne, %12, %c0_i32_9 : i32
    scf.if %13 {
      %c0_12 = arith.constant 0 : index
      %c0_13 = arith.constant 0 : index
      %17 = vector.load %arg6[%c0_12, %c0_13] : memref<1x128xf32, #tpu.memory_space<vmem>>, vector<1x128xf32>
      %18 = vector.broadcast %17 : vector<1x128xf32> to vector<16x128xf32>
      %19 = arith.addf %10, %18 : vector<16x128xf32>
      %c0_14 = arith.constant 0 : index
      %c0_15 = arith.constant 0 : index
      %20 = vector.load %arg7[%c0_14, %c0_15] : memref<16x128xf32, #tpu.memory_space<vmem>>, vector<16x128xf32>
      tpu.vector_store %arg7[%c0_14, %c0_15], %19 {strides = array<i32>} : memref<16x128xf32, #tpu.memory_space<vmem>>, vector<16x128xf32>,
    } else {
    }
    %c0_i32_10 = arith.constant 0 : i32
    %14 = arith.cmpi sgt, %arg1, %c0_i32_10 : i32
    %15 = arith.extui %14 : i1 to i32
    %c0_i32_11 = arith.constant 0 : i32
    %16 = arith.cmpi ne, %15, %c0_i32_11 : i32
    scf.if %16 {
      %c0_12 = arith.constant 0 : index
      %c0_13 = arith.constant 0 : index
      %17 = vector.load %arg7[%c0_12, %c0_13] : memref<16x128xf32, #tpu.memory_space<vmem>>, vector<16x128xf32>
      %18 = arith.addf %17, %10 : vector<16x128xf32>
      %c0_14 = arith.constant 0 : index
      %c0_15 = arith.constant 0 : index
      %19 = vector.load %arg7[%c0_14, %c0_15] : memref<16x128xf32, #tpu.memory_space<vmem>>, vector<16x128xf32>
      tpu.vector_store %arg7[%c0_14, %c0_15], %18 {strides = array<i32>} : memref<16x128xf32, #tpu.memory_space<vmem>>, vector<16x128xf32>,
    } else {
    }
    return
  }
  func.func @transform_0(%arg0: i32, %arg1: i32) -> (i32, i32) {
    %c0_i32 = arith.constant 0 : i32
    %c0_i32_0 = arith.constant 0 : i32
    return %arg0, %c0_i32 : i32, i32
  }
  func.func @transform_1(%arg0: i32, %arg1: i32) -> (i32, i32) {
    %c0_i32 = arith.constant 0 : i32
    %c0_i32_0 = arith.constant 0 : i32
    return %c0_i32, %arg1 : i32, i32
  }
  func.func @transform_2(%arg0: i32, %arg1: i32) -> (i32, i32) {
    %c0_i32 = arith.constant 0 : i32
    %c0_i32_0 = arith.constant 0 : i32
    return %c0_i32, %arg1 : i32, i32
  }
  func.func @transform_3(%arg0: i32, %arg1: i32) -> (i32, i32) {
    %c0_i32 = arith.constant 0 : i32
    %c0_i32_0 = arith.constant 0 : i32
    return %arg1, %c0_i32 : i32, i32
  }
  func.func @transform_4(%arg0: i32, %arg1: i32) -> (i32, i32) {
    %c0_i32 = arith.constant 0 : i32
    %c0_i32_0 = arith.constant 0 : i32
    %c0_i32_1 = arith.constant 0 : i32
    return %c0_i32, %c0_i32_0 : i32, i32
  }
  func.func @transform_5(%arg0: i32, %arg1: i32) -> (i32, i32) {
    %c0_i32 = arith.constant 0 : i32
    %c0_i32_0 = arith.constant 0 : i32
    return %arg0, %c0_i32 : i32, i32
  }
}

</mosaic_0001>

<llo_original>
// kernel: tpu_custom_call.1
$region0: #{tpu_custom_call.1}
  #allocation0 [shape = 'u32[]', space=smem, size = 0x4, offset = 0x4, fixed_abs, tag = 'smem constant byte address 0x4 - core index']
  #allocation1 [shape = 'u32[144,128]{1,0:T(1,128)}', space=vmem, size = 0x12000, scoped, tag = 'internal scratch']
  %s0 = inlined_call_operand.hbm [shape: bf16[16,128], index: 0, kind: input, shape index: {}]
  %s1 = inlined_call_operand.hbm [shape: bf16[128,256], index: 1, kind: input, shape index: {}]
  %s2 = inlined_call_operand.vmem [shape: f32[1,256], index: 2, kind: input, shape index: {}]
  %s3 = inlined_call_operand.hbm [shape: bf16[256,128], index: 3, kind: input, shape index: {}]
  %s4 = inlined_call_operand.vmem [shape: f32[1,128], index: 4, kind: input, shape index: {}]
  %s5 = inlined_call_operand.hbm [shape: f32[16,128], index: 5, kind: output, shape index: {}]
  %s6 = sld [smem:[#allocation0]]
  $region50: #{tpu_custom_call.1} parent=0
    _
  %s8 = ssub.s32 1, %s6
  %s9 = scalar_select 0, %s8, %s6
  $region1: #{tpu_custom_call.1} parent=0
    #allocation2 [shape = 'u8[4096]{0}', space=vmem, size = 0x1000, scoped, tag = 'input window, operand 0, single buffered']
    #allocation3 [shape = 's32[1]{0}', space=sflag, size = 0x4, scoped, tag = 'scoped memory for tpu_custom_call.1']
    #allocation4 [shape = 's32[1]{0}', space=sflag, size = 0x4, scoped, tag = 'scoped memory for tpu_custom_call.1']
    #allocation5 [shape = 'u8[65536]{0}', space=vmem, size = 0x10000, scoped, tag = 'input window, operand 1, single buffered']
    #allocation6 [shape = 's32[1]{0}', space=sflag, size = 0x4, scoped, tag = 'scoped memory for tpu_custom_call.1']
    #allocation7 [shape = 'u8[65536]{0}', space=vmem, size = 0x10000, scoped, tag = 'input window, operand 3, single buffered']
    #allocation8 [shape = 'u8[8192]{0}', space=vmem, size = 0x2000, scoped, tag = 'output window, operand 0, single buffered']
    %10 = vsyncpa [#allocation3], 0
    %11 = vsyncpa [#allocation6], 0
    %12 = vsyncpa [#allocation4], 0
    // Predicated region
    $region2: #{tpu_custom_call.1} parent=1 // pred_check
      _
    $region3: #{tpu_custom_call.1} parent=1 // pred_check_branch
      %14 = sbr.rel (0) target = $region5
    $region4: #{tpu_custom_call.1} parent=1 // pred_region
      %s16 = ssub.s32 128, 128
      %17 = vsyncadd [#allocation3], %s16
      %s18 = sshll.u32 [#allocation2], 4
      %s19 = int_to_ptr.vmem [resolvable:$true] %s18
      %24 = dma.hbm_to_vmem [thread:$0]  %s0, 128, %s19, [#allocation3], 64, 64, 4
    $region5: #{tpu_custom_call.1} parent=1 // pred_fallthru
      _
    // Predicated region
    $region6: #{tpu_custom_call.1} parent=1 // pred_check
      _
    $region7: #{tpu_custom_call.1} parent=1 // pred_check_branch
      %26 = sbr.rel (0) target = $region9
    $region8: #{tpu_custom_call.1} parent=1 // pred_region
      %s28 = ssub.s32 2048, 2048
      %29 = vsyncadd [#allocation6], %s28
      %s30 = sshll.u32 [#allocation5], 4
      %s31 = int_to_ptr.vmem [resolvable:$true] %s30
      %36 = dma.hbm_to_vmem [thread:$0]  %s1, 2048, %s31, [#allocation6], 128, 128, 8
    $region9: #{tpu_custom_call.1} parent=1 // pred_fallthru
      _
    // Predicated region
    $region10: #{tpu_custom_call.1} parent=1 // pred_check
      _
    $region11: #{tpu_custom_call.1} parent=1 // pred_check_branch
      %38 = sbr.rel (0) target = $region13
    $region12: #{tpu_custom_call.1} parent=1 // pred_region
      _
    $region13: #{tpu_custom_call.1} parent=1 // pred_fallthru
      _
    // Predicated region
    $region14: #{tpu_custom_call.1} parent=1 // pred_check
      _
    $region15: #{tpu_custom_call.1} parent=1 // pred_check_branch
      %40 = sbr.rel (0) target = $region17
    $region16: #{tpu_custom_call.1} parent=1 // pred_region
      %s42 = ssub.s32 2048, 2048
      %43 = vsyncadd [#allocation6], %s42
      %s44 = sshll.u32 [#allocation7], 4
      %s45 = int_to_ptr.vmem [resolvable:$true] %s44
      %50 = dma.hbm_to_vmem [thread:$0]  %s3, 2048, %s45, [#allocation6], 64, 64, 4
    $region17: #{tpu_custom_call.1} parent=1 // pred_fallthru
      _
    // Predicated region
    $region18: #{tpu_custom_call.1} parent=1 // pred_check
      _
    $region19: #{tpu_custom_call.1} parent=1 // pred_check_branch
      %52 = sbr.rel (0) target = $region21
    $region20: #{tpu_custom_call.1} parent=1 // pred_region
      _
    $region21: #{tpu_custom_call.1} parent=1 // pred_fallthru
      _
    // Predicated region
    $region22: #{tpu_custom_call.1} parent=1 // pred_check
      _
    $region23: #{tpu_custom_call.1} parent=1 // pred_check_branch
      %54 = sbr.rel (0) target = $region25
    $region24: #{tpu_custom_call.1} parent=1 // pred_region
      %55 = dma.done [#allocation3], 128
    $region25: #{tpu_custom_call.1} parent=1 // pred_fallthru
      _
    // Predicated region
    $region26: #{tpu_custom_call.1} parent=1 // pred_check
      _
    $region27: #{tpu_custom_call.1} parent=1 // pred_check_branch
      %57 = sbr.rel (0) target = $region29
    $region28: #{tpu_custom_call.1} parent=1 // pred_region
      %58 = dma.done [#allocation6], 2048
    $region29: #{tpu_custom_call.1} parent=1 // pred_fallthru
      _
    // Predicated region
    $region30: #{tpu_custom_call.1} parent=1 // pred_check
      _
    $region31: #{tpu_custom_call.1} parent=1 // pred_check_branch
      %60 = sbr.rel (0) target = $region33
    $region32: #{tpu_custom_call.1} parent=1 // pred_region
      %61 = dma.done [#allocation6], 2048
    $region33: #{tpu_custom_call.1} parent=1 // pred_fallthru
      _
    %v63 = vld [vmem:[#allocation2] sm:$0xf]
    %v64 = vld [vmem:[#allocation2 + $0x4] sm:$0xf]
    %v65 = vld [vmem:[#allocation5] sm:$0xff]
    %v66 = vld [vmem:[#allocation5 + $0x8] sm:$0xff]
    %v67 = vld [vmem:[#allocation5 + $0x10] sm:$0xff]
    %v68 = vld [vmem:[#allocation5 + $0x18] sm:$0xff]
    %v69 = vld [vmem:[#allocation5 + $0x20] sm:$0xff]
    %v70 = vld [vmem:[#allocation5 + $0x28] sm:$0xff]
    %v71 = vld [vmem:[#allocation5 + $0x30] sm:$0xff]
    %v72 = vld [vmem:[#allocation5 + $0x38] sm:$0xff]
    %v73 = vld [vmem:[#allocation5 + $0x40] sm:$0xff]
    %v74 = vld [vmem:[#allocation5 + $0x48] sm:$0xff]
    %v75 = vld [vmem:[#allocation5 + $0x50] sm:$0xff]
    %v76 = vld [vmem:[#allocation5 + $0x58] sm:$0xff]
    %v77 = vld [vmem:[#allocation5 + $0x60] sm:$0xff]
    %v78 = vld [vmem:[#allocation5 + $0x68] sm:$0xff]
    %v79 = vld [vmem:[#allocation5 + $0x70] sm:$0xff]
    %v80 = vld [vmem:[#allocation5 + $0x78] sm:$0xff]
    %v81 = vld [vmem:[%s2] sm:$0x3]
    %v83 = vlaneseq
    %v84 = vshrl.u32 %v83, 7
    %v85 = vsub.s32 0, %v84
    %v86 = vrot.slane %v81, %v85
    %v87 = vlaneseq
    %v88 = vshrl.u32 %v87, 7
    %v89 = vsub.s32 1, %v88
    %v90 = vrot.slane %v81, %v89
    %v95 = vunpack.c.l.b16 %v63
    %v96 = vunpack.c.l.b16 %v64
    %v97 = vpack.c.b16 %v96, %v95
    %v115 = vunpack.c.l.b16 %v65
    %v116 = vunpack.c.h.b16 %v65
    %v117 = vunpack.c.l.b16 %v66
    %v118 = vunpack.c.h.b16 %v66
    %v119 = vunpack.c.l.b16 %v67
    %v120 = vunpack.c.h.b16 %v67
    %v121 = vunpack.c.l.b16 %v68
    %v122 = vunpack.c.h.b16 %v68
    %v123 = vunpack.c.l.b16 %v69
    %v124 = vunpack.c.h.b16 %v69
    %v125 = vunpack.c.l.b16 %v70
    %v126 = vunpack.c.h.b16 %v70
    %v127 = vunpack.c.l.b16 %v71
    %v128 = vunpack.c.h.b16 %v71
    %v129 = vunpack.c.l.b16 %v72
    %v130 = vunpack.c.h.b16 %v72
    %v131 = vunpack.c.l.b16 %v73
    %v132 = vunpack.c.h.b16 %v73
    %v133 = vunpack.c.l.b16 %v74
    %v134 = vunpack.c.h.b16 %v74
    %v135 = vunpack.c.l.b16 %v75
    %v136 = vunpack.c.h.b16 %v75
    %v137 = vunpack.c.l.b16 %v76
    %v138 = vunpack.c.h.b16 %v76
    %v139 = vunpack.c.l.b16 %v77
    %v140 = vunpack.c.h.b16 %v77
    %v141 = vunpack.c.l.b16 %v78
    %v142 = vunpack.c.h.b16 %v78
    %v143 = vunpack.c.l.b16 %v79
    %v144 = vunpack.c.h.b16 %v79
    %v145 = vunpack.c.l.b16 %v80
    %v146 = vunpack.c.h.b16 %v80
    %v147 = vpack.c.b16 %v117, %v115
    %v148 = vpack.c.b16 %v118, %v116
    %v149 = vpack.c.b16 %v121, %v119
    %v150 = vpack.c.b16 %v122, %v120
    %v151 = vpack.c.b16 %v125, %v123
    %v152 = vpack.c.b16 %v126, %v124
    %v153 = vpack.c.b16 %v129, %v127
    %v154 = vpack.c.b16 %v130, %v128
    %v155 = vpack.c.b16 %v133, %v131
    %v156 = vpack.c.b16 %v134, %v132
    %v157 = vpack.c.b16 %v137, %v135
    %v158 = vpack.c.b16 %v138, %v136
    %v159 = vpack.c.b16 %v141, %v139
    %v160 = vpack.c.b16 %v142, %v140
    %v161 = vpack.c.b16 %v145, %v143
    %v162 = vpack.c.b16 %v146, %v144
    %179 = vmatprep.subr.bf16.mxu0 %v162
    %180 = vmatpush1.bf16.msra.mxu0 %v161
    %181 = vmatprep.subr.bf16.mxu0 %v160
    %182 = vmatpush1.bf16.msra.mxu0 %v159
    %183 = vmatprep.subr.bf16.mxu0 %v158
    %184 = vmatpush1.bf16.msra.mxu0 %v157
    %185 = vmatprep.subr.bf16.mxu0 %v156
    %186 = vmatpush1.bf16.msra.mxu0 %v155
    %187 = vmatprep.subr.bf16.mxu0 %v154
    %188 = vmatpush1.bf16.msra.mxu0 %v153
    %189 = vmatprep.subr.bf16.mxu0 %v152
    %190 = vmatpush1.bf16.msra.mxu0 %v151
    %191 = vmatprep.subr.bf16.mxu0 %v150
    %192 = vmatpush1.bf16.msra.mxu0 %v149
    %193 = vmatprep.subr.bf16.mxu0 %v148
    %194 = vmatpush1.bf16.msra.mxu0 %v147
    %195 = vmatprep.subr.bf16.mxu0 0
    %196 = vmatpush2.bf16.msra.mxu0 0
    %197 = vmatprep.subr.bf16.mxu0 0
    %198 = vmatpush2.bf16.msra.mxu0 0
    %199 = vmatprep.subr.bf16.mxu0 0
    %200 = vmatpush2.bf16.msra.mxu0 0
    %201 = vmatprep.subr.bf16.mxu0 0
    %202 = vmatpush2.bf16.msra.mxu0 0
    %203 = vmatprep.subr.bf16.mxu0 0
    %204 = vmatpush2.bf16.msra.mxu0 0
    %205 = vmatprep.subr.bf16.mxu0 0
    %206 = vmatpush2.bf16.msra.mxu0 0
    %207 = vmatprep.subr.bf16.mxu0 0
    %208 = vmatpush2.bf16.msra.mxu0 0
    %209 = vmatprep.subr.bf16.mxu0 0
    %210 = vmatpush2.bf16.msra.mxu0 0
    %211 = vmatprep.mubr.bf16.mxu0 0
    %212 = vmatmul.mubr.bf16.gmra.mxu0 %v97
    %v213 = vpop.f32.mrf.mxu0
    %v214 = vadd.f32 %v86, %v213
    %v215 = vpop.f32.mrf.mxu0
    %v216 = vadd.f32 %v90, %v215
    %v217 = vpop.f32.mrf.mxu0
    %v218 = vadd.f32 %v86, %v217
    %v219 = vpop.f32.mrf.mxu0
    %v220 = vadd.f32 %v90, %v219
    %221 = vdwg.mxu0
    %v222 = vmax.f32 %v214, 0.0
    %v223 = vmax.f32 %v216, 0.0
    %v224 = vmax.f32 %v218, 0.0
    %v225 = vmax.f32 %v220, 0.0
    %v226 = vpack.c.bf16 %v224, %v222
    %v227 = vpack.c.bf16 %v225, %v223
    %v228 = vld [vmem:[#allocation7] sm:$0xf]
    %v229 = vld [vmem:[#allocation7 + $0x4] sm:$0xf]
    %v230 = vld [vmem:[#allocation7 + $0x8] sm:$0xf]
    %v231 = vld [vmem:[#allocation7 + $0xc] sm:$0xf]
    %v232 = vld [vmem:[#allocation7 + $0x10] sm:$0xf]
    %v233 = vld [vmem:[#allocation7 + $0x14] sm:$0xf]
    %v234 = vld [vmem:[#allocation7 + $0x18] sm:$0xf]
    %v235 = vld [vmem:[#allocation7 + $0x1c] sm:$0xf]
    %v236 = vld [vmem:[#allocation7 + $0x20] sm:$0xf]
    %v237 = vld [vmem:[#allocation7 + $0x24] sm:$0xf]
    %v238 = vld [vmem:[#allocation7 + $0x28] sm:$0xf]
    %v239 = vld [vmem:[#allocation7 + $0x2c] sm:$0xf]
    %v240 = vld [vmem:[#allocation7 + $0x30] sm:$0xf]
    %v241 = vld [vmem:[#allocation7 + $0x34] sm:$0xf]
    %v242 = vld [vmem:[#allocation7 + $0x38] sm:$0xf]
    %v243 = vld [vmem:[#allocation7 + $0x3c] sm:$0xf]
    %v244 = vld [vmem:[#allocation7 + $0x40] sm:$0xf]
    %v245 = vld [vmem:[#allocation7 + $0x44] sm:$0xf]
    %v246 = vld [vmem:[#allocation7 + $0x48] sm:$0xf]
    %v247 = vld [vmem:[#allocation7 + $0x4c] sm:$0xf]
    %v248 = vld [vmem:[#allocation7 + $0x50] sm:$0xf]
    %v249 = vld [vmem:[#allocation7 + $0x54] sm:$0xf]
    %v250 = vld [vmem:[#allocation7 + $0x58] sm:$0xf]
    %v251 = vld [vmem:[#allocation7 + $0x5c] sm:$0xf]
    %v252 = vld [vmem:[#allocation7 + $0x60] sm:$0xf]
    %v253 = vld [vmem:[#allocation7 + $0x64] sm:$0xf]
    %v254 = vld [vmem:[#allocation7 + $0x68] sm:$0xf]
    %v255 = vld [vmem:[#allocation7 + $0x6c] sm:$0xf]
    %v256 = vld [vmem:[#allocation7 + $0x70] sm:$0xf]
    %v257 = vld [vmem:[#allocation7 + $0x74] sm:$0xf]
    %v258 = vld [vmem:[#allocation7 + $0x78] sm:$0xf]
    %v259 = vld [vmem:[#allocation7 + $0x7c] sm:$0xf]
    %v292 = vunpack.c.l.b16 %v228
    %v293 = vunpack.c.l.b16 %v229
    %v294 = vunpack.c.l.b16 %v230
    %v295 = vunpack.c.l.b16 %v231
    %v296 = vunpack.c.l.b16 %v232
    %v297 = vunpack.c.l.b16 %v233
    %v298 = vunpack.c.l.b16 %v234
    %v299 = vunpack.c.l.b16 %v235
    %v300 = vunpack.c.l.b16 %v236
    %v301 = vunpack.c.l.b16 %v237
    %v302 = vunpack.c.l.b16 %v238
    %v303 = vunpack.c.l.b16 %v239
    %v304 = vunpack.c.l.b16 %v240
    %v305 = vunpack.c.l.b16 %v241
    %v306 = vunpack.c.l.b16 %v242
    %v307 = vunpack.c.l.b16 %v243
    %v308 = vunpack.c.l.b16 %v244
    %v309 = vunpack.c.l.b16 %v245
    %v310 = vunpack.c.l.b16 %v246
    %v311 = vunpack.c.l.b16 %v247
    %v312 = vunpack.c.l.b16 %v248
    %v313 = vunpack.c.l.b16 %v249
    %v314 = vunpack.c.l.b16 %v250
    %v315 = vunpack.c.l.b16 %v251
    %v316 = vunpack.c.l.b16 %v252
    %v317 = vunpack.c.l.b16 %v253
    %v318 = vunpack.c.l.b16 %v254
    %v319 = vunpack.c.l.b16 %v255
    %v320 = vunpack.c.l.b16 %v256
    %v321 = vunpack.c.l.b16 %v257
    %v322 = vunpack.c.l.b16 %v258
    %v323 = vunpack.c.l.b16 %v259
    %v324 = vpack.c.b16 %v293, %v292
    %v325 = vpack.c.b16 %v295, %v294
    %v326 = vpack.c.b16 %v297, %v296
    %v327 = vpack.c.b16 %v299, %v298
    %v328 = vpack.c.b16 %v301, %v300
    %v329 = vpack.c.b16 %v303, %v302
    %v330 = vpack.c.b16 %v305, %v304
    %v331 = vpack.c.b16 %v307, %v306
    %v332 = vpack.c.b16 %v309, %v308
    %v333 = vpack.c.b16 %v311, %v310
    %v334 = vpack.c.b16 %v313, %v312
    %v335 = vpack.c.b16 %v315, %v314
    %v336 = vpack.c.b16 %v317, %v316
    %v337 = vpack.c.b16 %v319, %v318
    %v338 = vpack.c.b16 %v321, %v320
    %v339 = vpack.c.b16 %v323, %v322
    %356 = vmatprep.subr.bf16.mxu0 0
    %357 = vmatpush1.bf16.msra.mxu0 %v331
    %358 = vmatprep.subr.bf16.mxu0 0
    %359 = vmatpush1.bf16.msra.mxu0 %v330
    %360 = vmatprep.subr.bf16.mxu0 0
    %361 = vmatpush1.bf16.msra.mxu0 %v329
    %362 = vmatprep.subr.bf16.mxu0 0
    %363 = vmatpush1.bf16.msra.mxu0 %v328
    %364 = vmatprep.subr.bf16.mxu0 0
    %365 = vmatpush1.bf16.msra.mxu0 %v327
    %366 = vmatprep.subr.bf16.mxu0 0
    %367 = vmatpush1.bf16.msra.mxu0 %v326
    %368 = vmatprep.subr.bf16.mxu0 0
    %369 = vmatpush1.bf16.msra.mxu0 %v325
    %370 = vmatprep.subr.bf16.mxu0 0
    %371 = vmatpush1.bf16.msra.mxu0 %v324
    %372 = vmatprep.subr.bf16.mxu0 0
    %373 = vmatpush2.bf16.msra.mxu0 %v339
    %374 = vmatprep.subr.bf16.mxu0 0
    %375 = vmatpush2.bf16.msra.mxu0 %v338
    %376 = vmatprep.subr.bf16.mxu0 0
    %377 = vmatpush2.bf16.msra.mxu0 %v337
    %378 = vmatprep.subr.bf16.mxu0 0
    %379 = vmatpush2.bf16.msra.mxu0 %v336
    %380 = vmatprep.subr.bf16.mxu0 0
    %381 = vmatpush2.bf16.msra.mxu0 %v335
    %382 = vmatprep.subr.bf16.mxu0 0
    %383 = vmatpush2.bf16.msra.mxu0 %v334
    %384 = vmatprep.subr.bf16.mxu0 0
    %385 = vmatpush2.bf16.msra.mxu0 %v333
    %386 = vmatprep.subr.bf16.mxu0 0
    %387 = vmatpush2.bf16.msra.mxu0 %v332
    %388 = vmatprep.mubr.bf16.mxu0 %v227
    %389 = vmatmul.mubr.bf16.gmra.mxu0 %v226
    %v390 = vpop.f32.mrf.mxu0
    %v391 = vadd.f32 0.0, %v390
    %v392 = vpop.f32.mrf.mxu0
    %v393 = vpop.f32.mrf.mxu0
    %v394 = vadd.f32 0.0, %v393
    %v395 = vpop.f32.mrf.mxu0
    %396 = vdwg.mxu0
    %p397 = scmp.eq.s32.totalorder 0, 0
    // Predicated region
    $region34: #{tpu_custom_call.1} parent=1 // pred_check
      %p398 = pneg %p397
    $region35: #{tpu_custom_call.1} parent=1 // pred_check_branch
      %400 = sbr.rel (%p398) target = $region37
    $region36: #{tpu_custom_call.1} parent=1 // pred_region
      %v401 = vld [vmem:[%s4] sm:$0x1]
      %v403 = vlaneseq
      %v404 = vshrl.u32 %v403, 7
      %v405 = vsub.s32 0, %v404
      %v406 = vrot.slane %v401, %v405
      %v408 = vadd.f32 %v391, %v406
      %v409 = vadd.f32 %v394, %v406
      %410 = vst [vmem:[#allocation8] sm:$0xff] %v408
      %411 = vst [vmem:[#allocation8 + $0x8] sm:$0xff] %v409
    $region37: #{tpu_custom_call.1} parent=1 // pred_fallthru
      _
    %p412 = scmp.gt.s32.totalorder 0, 0
    // Predicated region
    $region38: #{tpu_custom_call.1} parent=1 // pred_check
      %p413 = pneg %p412
    $region39: #{tpu_custom_call.1} parent=1 // pred_check_branch
      %415 = sbr.rel (%p413) target = $region41
    $region40: #{tpu_custom_call.1} parent=1 // pred_region
      %v416 = vld [vmem:[#allocation8] sm:$0xff]
      %v417 = vld [vmem:[#allocation8 + $0x8] sm:$0xff]
      %v418 = vadd.f32 %v416, %v391
      %v419 = vadd.f32 %v417, %v394
      %420 = vst [vmem:[#allocation8] sm:$0xff] %v418
      %421 = vst [vmem:[#allocation8 + $0x8] sm:$0xff] %v419
    $region41: #{tpu_custom_call.1} parent=1 // pred_fallthru
      _
    // Predicated region
    $region42: #{tpu_custom_call.1} parent=1 // pred_check
      _
    $region43: #{tpu_custom_call.1} parent=1 // pred_check_branch
      %423 = sbr.rel (0) target = $region45
    $region44: #{tpu_custom_call.1} parent=1 // pred_region
      %s425 = ssub.s32 256, 256
      %426 = vsyncadd [#allocation4], %s425
      %s427 = sshll.u32 [#allocation8], 4
      %s428 = int_to_ptr.vmem [resolvable:$true] %s427
      %433 = dma.vmem_to_hbm [thread:$0]  %s428, 256, %s5, [#allocation4], 128, 128, 8
    $region45: #{tpu_custom_call.1} parent=1 // pred_fallthru
      _
    // Predicated region
    $region46: #{tpu_custom_call.1} parent=1 // pred_check
      _
    $region47: #{tpu_custom_call.1} parent=1 // pred_check_branch
      %435 = sbr.rel (0) target = $region49
    $region48: #{tpu_custom_call.1} parent=1 // pred_region
      %436 = dma.done [#allocation4], 256
    $region49: #{tpu_custom_call.1} parent=1 // pred_fallthru
      _
    %437 = vsyncpa [#allocation3], 1
    %438 = vsyncpa [#allocation6], 1
    %439 = vsyncpa [#allocation4], 1

</llo_original>
